<compile_context>
chip_gen: v6e
topology: v6e:2x2x1
jax: 0.10.0
libtpu: 0.0.40
codegen_flags: <defaults>
</compile_context>

<pallas_src>
import functools

import jax
import jax.numpy as jnp
from jax.experimental import pallas as pl
from jax.experimental.pallas import tpu as pltpu

EPS = 1e-5


def _fused_kernel(w_ref, gate_ref, g_ref, b_ref, x_ref, o_ref, y_ref, *, inv_m):
    """Single-pass fused SE-gate + 1x1 conv + training-mode BatchNorm.

    w_ref:    [Cout, Cin]  raw 1x1 conv weight (f32)
    gate_ref: [1, Cin]     SE gate logits (f32)
    g_ref:    [Cout, 1]    BN gamma (f32)
    b_ref:    [Cout, 1]    BN beta (f32)
    x_ref:    [Cin, M]     channels-major activation slab (native dtype)
    o_ref:    [Cout, M]    output slab (native dtype)
    y_ref:    [Cout, M]    f32 VMEM scratch holding the conv result
    """
    # Fold the sigmoid gate into the weight:  W @ (s*x) == (W * s^T) @ x.
    # 16x16 elementwise work -> free on the VPU/EUP, keeps the big [Cin, M]
    # operand untouched.
    w_eff = w_ref[...] * jax.nn.sigmoid(gate_ref[...])           # [Cout, Cin]
    w_eff = w_eff.astype(x_ref.dtype)                            # bf16-friendly MXU feed

    # Single MXU pass; result stays resident in VMEM for the whole kernel.
    y_ref[...] = jnp.dot(w_eff, x_ref[...],
                         preferred_element_type=jnp.float32)     # [Cout, M] f32
    y = y_ref[...]

    # Training-mode batch statistics (biased variance), centered form to
    # avoid E[y^2]-E[y]^2 cancellation.
    mean = jnp.sum(y, axis=1, keepdims=True) * inv_m             # [Cout, 1]
    centered = y - mean
    var = jnp.sum(centered * centered, axis=1, keepdims=True) * inv_m

    # BN affine, finalized in-kernel (rsqrt on the EUP).
    scale = g_ref[...] * jax.lax.rsqrt(var + EPS)                # [Cout, 1]
    o_ref[...] = (centered * scale + b_ref[...]).astype(o_ref.dtype)


@jax.jit
def fused_forward(x21, x17, w, gamma, beta):
    """x21: [1, C, 1, 1] gate logits, x17: [N, C, H, W],
    w: [Cout, Cin] 1x1 conv weight, gamma/beta: [Cout]. Returns [N, Cout, H, W]."""
    N, C, H, W = x17.shape
    Cout = w.shape[0]
    M = N * H * W

    # NCHW -> channels-major [C, M]; for N == 1 (the module's shape) this is a
    # free reshape -- no HBM transpose and no dtype up-cast of the big operand.
    if N == 1:
        x_cm = x17.reshape(C, M)
    else:
        # TODO(synk): for N > 1, carry N as a grid axis (x viewed as [N, C, H*W])
        # instead of materializing this HBM transpose.
        x_cm = jnp.transpose(x17, (1, 0, 2, 3)).reshape(C, M)

    gate = x21.reshape(1, C).astype(jnp.float32)
    w_f32 = w.astype(jnp.float32)
    g = gamma.reshape(Cout, 1).astype(jnp.float32)
    b = beta.reshape(Cout, 1).astype(jnp.float32)

    # TODO(synk): BatchNorm running_mean/running_var momentum update (module
    # buffer state) is not produced; only the forward output is computed.

    # TODO(synk): for very large M (> ~tens of MB per slab) re-introduce lane
    # tiling with y kept in a persistent VMEM scratch; at C=16 / 112x112 the
    # whole-slab kernel is far below the scoped-VMEM limit on v5e/v6e/v7x.
    kernel = functools.partial(_fused_kernel, inv_m=1.0 / M)

    out_cm = pl.pallas_call(
        kernel,
        out_shape=jax.ShapeDtypeStruct((Cout, M), x17.dtype),
        grid_spec=pltpu.PrefetchScalarGridSpec(
            num_scalar_prefetch=0,
            grid=(1,),
            in_specs=[
                pl.BlockSpec((Cout, C), lambda i: (0, 0)),   # conv weight
                pl.BlockSpec((1, C), lambda i: (0, 0)),      # SE gate logits
                pl.BlockSpec((Cout, 1), lambda i: (0, 0)),   # BN gamma
                pl.BlockSpec((Cout, 1), lambda i: (0, 0)),   # BN beta
                pl.BlockSpec((C, M), lambda i: (0, 0)),      # activation slab
            ],
            out_specs=pl.BlockSpec((Cout, M), lambda i: (0, 0)),
            scratch_shapes=[pltpu.VMEM((Cout, M), jnp.float32)],  # resident y
        ),
        compiler_params=pltpu.CompilerParams(
            dimension_semantics=("arbitrary",)),
    )(w_f32, gate, g, b, x_cm)

    if N == 1:
        return out_cm.reshape(1, Cout, H, W)
    return jnp.transpose(out_cm.reshape(Cout, N, H, W), (1, 0, 2, 3))


def reference_forward(x21, x17, w, gamma, beta):
    s = jax.nn.sigmoid(x21)                                    # [1, C, 1, 1]
    x23 = s * x17                                              # [N, C, H, W]
    x24 = jnp.einsum("oc,nchw->nohw", w, x23)                  # 1x1 conv, no bias
    mean = jnp.mean(x24, axis=(0, 2, 3), keepdims=True)
    var = jnp.mean((x24 - mean) ** 2, axis=(0, 2, 3), keepdims=True)
    xn = (x24 - mean) / jnp.sqrt(var + EPS)
    return xn * gamma.reshape(1, -1, 1, 1) + beta.reshape(1, -1, 1, 1)


if __name__ == "__main__":
    key = jax.random.PRNGKey(0)
    k1, k2, k3 = jax.random.split(key, 3)

    # Small shape consistent with the module: channel count is fixed at 16 by
    # the 16->16 1x1 conv; spatial is shrunk from 112 to 16 for the test.
    N, C, H, W = 1, 16, 16, 16
    x17 = jax.random.normal(k1, (N, C, H, W), dtype=jnp.float32)
    x21 = jax.random.normal(k2, (1, C, 1, 1), dtype=jnp.float32)

    # Deterministic synthetic parameters (no checkpoint); non-trivial BN affine.
    w = jax.random.normal(k3, (C, C), dtype=jnp.float32) * 0.1   # [Cout, Cin]
    gamma = jnp.linspace(0.5, 1.5, C, dtype=jnp.float32)
    beta = jnp.linspace(-0.2, 0.2, C, dtype=jnp.float32)

    out = fused_forward(x21, x17, w, gamma, beta)
    jax.block_until_ready(out)

    ref = reference_forward(x21, x17, w, gamma, beta)
    assert out.shape == (N, C, H, W)
    max_err = float(jnp.max(jnp.abs(out - ref)))
    assert jnp.allclose(out, ref, atol=2e-4, rtol=2e-4), max_err

    print("KERNEL_OK")
</pallas_src>

<mosaic_0001>
module attributes {stable_mosaic.version = 11 : i64} {
  func.func @_fused_kernel(%arg0: i32, %arg1: memref<16x16xf32, #tpu.memory_space<vmem>>, %arg2: memref<1x16xf32, #tpu.memory_space<vmem>>, %arg3: memref<16x1xf32, #tpu.memory_space<vmem>>, %arg4: memref<16x1xf32, #tpu.memory_space<vmem>>, %arg5: memref<16x256xf32, #tpu.memory_space<vmem>>, %arg6: memref<16x256xf32, #tpu.memory_space<vmem>>, %arg7: memref<16x256xf32, #tpu.memory_space<vmem>>) attributes {dimension_semantics = [#tpu.dimension_semantics<arbitrary>], iteration_bounds = array<i64: 1>, scalar_prefetch = 0 : i64, scratch_operands = 1 : i64, tpu.core_type = #tpu.core_type<tc>, window_params = [{pipeline_mode = #tpu.pipeline_mode<synchronous>, transform_indices = @transform_0, window_bounds = array<i64: 16, 16>}, {pipeline_mode = #tpu.pipeline_mode<synchronous>, transform_indices = @transform_1, window_bounds = array<i64: 1, 16>}, {pipeline_mode = #tpu.pipeline_mode<synchronous>, transform_indices = @transform_2, window_bounds = array<i64: 16, 1>}, {pipeline_mode = #tpu.pipeline_mode<synchronous>, transform_indices = @transform_3, window_bounds = array<i64: 16, 1>}, {pipeline_mode = #tpu.pipeline_mode<synchronous>, transform_indices = @transform_4, window_bounds = array<i64: 16, 256>}, {pipeline_mode = #tpu.pipeline_mode<synchronous>, transform_indices = @transform_5, window_bounds = array<i64: 16, 256>}]} {
    %c0 = arith.constant 0 : index
    %c0_0 = arith.constant 0 : index
    %0 = vector.load %arg1[%c0, %c0_0] : memref<16x16xf32, #tpu.memory_space<vmem>>, vector<16x16xf32>
    %c0_1 = arith.constant 0 : index
    %c0_2 = arith.constant 0 : index
    %1 = vector.load %arg2[%c0_1, %c0_2] : memref<1x16xf32, #tpu.memory_space<vmem>>, vector<1x16xf32>
    %2 = arith.negf %1 : vector<1x16xf32>
    %3 = math.exp %2 : vector<1x16xf32>
    %cst = arith.constant 1.000000e+00 : f32
    %4 = vector.broadcast %cst : f32 to vector<1x16xf32>
    %5 = arith.addf %4, %3 : vector<1x16xf32>
    %6 = arith.divf %4, %5 : vector<1x16xf32>
    %7 = vector.broadcast %6 : vector<1x16xf32> to vector<16x16xf32>
    %8 = arith.mulf %0, %7 : vector<16x16xf32>
    %c0_3 = arith.constant 0 : index
    %c0_4 = arith.constant 0 : index
    %9 = vector.load %arg5[%c0_3, %c0_4] : memref<16x256xf32, #tpu.memory_space<vmem>>, vector<16x256xf32>
    %cst_5 = arith.constant dense<0.000000e+00> : vector<16x256xf32>
    %10 = tpu.matmul %8, %9, %cst_5 {dimension_numbers = #tpu.dot_dimension_numbers<[1], [0], [0], [1], [0, 0, 1, 1], [], []>} : vector<16x16xf32>, vector<16x256xf32>, vector<16x256xf32> -> vector<16x256xf32>
    %c0_6 = arith.constant 0 : index
    %c0_7 = arith.constant 0 : index
    %11 = vector.load %arg7[%c0_6, %c0_7] : memref<16x256xf32, #tpu.memory_space<vmem>>, vector<16x256xf32>
    tpu.vector_store %arg7[%c0_6, %c0_7], %10 {strides = array<i32>} : memref<16x256xf32, #tpu.memory_space<vmem>>, vector<16x256xf32>,
    %c0_8 = arith.constant 0 : index
    %c0_9 = arith.constant 0 : index
    %12 = vector.load %arg7[%c0_8, %c0_9] : memref<16x256xf32, #tpu.memory_space<vmem>>, vector<16x256xf32>
    %cst_10 = arith.constant dense<0.000000e+00> : vector<16xf32>
    %13 = vector.multi_reduction <add>, %12, %cst_10 [1] : vector<16x256xf32> to vector<16xf32>
    %14 = vector.shape_cast %13 : vector<16xf32> to vector<16x1xf32>
    %cst_11 = arith.constant 3.906250e-03 : f32
    %15 = vector.broadcast %cst_11 : f32 to vector<16x1xf32>
    %16 = arith.mulf %14, %15 : vector<16x1xf32>
    %17 = vector.broadcast %16 : vector<16x1xf32> to vector<16x256xf32>
    %18 = arith.subf %12, %17 : vector<16x256xf32>
    %19 = arith.mulf %18, %18 : vector<16x256xf32>
    %cst_12 = arith.constant dense<0.000000e+00> : vector<16xf32>
    %20 = vector.multi_reduction <add>, %19, %cst_12 [1] : vector<16x256xf32> to vector<16xf32>
    %21 = vector.shape_cast %20 : vector<16xf32> to vector<16x1xf32>
    %cst_13 = arith.constant 3.906250e-03 : f32
    %22 = vector.broadcast %cst_13 : f32 to vector<16x1xf32>
    %23 = arith.mulf %21, %22 : vector<16x1xf32>
    %c0_14 = arith.constant 0 : index
    %c0_15 = arith.constant 0 : index
    %24 = vector.load %arg3[%c0_14, %c0_15] : memref<16x1xf32, #tpu.memory_space<vmem>>, vector<16x1xf32>
    %cst_16 = arith.constant 9.99999974E-6 : f32
    %25 = vector.broadcast %cst_16 : f32 to vector<16x1xf32>
    %26 = arith.addf %23, %25 : vector<16x1xf32>
    %27 = math.rsqrt %26 : vector<16x1xf32>
    %28 = arith.mulf %24, %27 : vector<16x1xf32>
    %29 = vector.broadcast %28 : vector<16x1xf32> to vector<16x256xf32>
    %30 = arith.mulf %18, %29 : vector<16x256xf32>
    %c0_17 = arith.constant 0 : index
    %c0_18 = arith.constant 0 : index
    %31 = vector.load %arg4[%c0_17, %c0_18] : memref<16x1xf32, #tpu.memory_space<vmem>>, vector<16x1xf32>
    %32 = vector.broadcast %31 : vector<16x1xf32> to vector<16x256xf32>
    %33 = arith.addf %30, %32 : vector<16x256xf32>
    %c0_19 = arith.constant 0 : index
    %c0_20 = arith.constant 0 : index
    %34 = vector.load %arg6[%c0_19, %c0_20] : memref<16x256xf32, #tpu.memory_space<vmem>>, vector<16x256xf32>
    tpu.vector_store %arg6[%c0_19, %c0_20], %33 {strides = array<i32>} : memref<16x256xf32, #tpu.memory_space<vmem>>, vector<16x256xf32>,
    return
  }
  func.func @transform_0(%arg0: i32) -> (i32, i32) {
    %c0_i32 = arith.constant 0 : i32
    %c0_i32_0 = arith.constant 0 : i32
    %c0_i32_1 = arith.constant 0 : i32
    return %c0_i32, %c0_i32_0 : i32, i32
  }
  func.func @transform_1(%arg0: i32) -> (i32, i32) {
    %c0_i32 = arith.constant 0 : i32
    %c0_i32_0 = arith.constant 0 : i32
    %c0_i32_1 = arith.constant 0 : i32
    return %c0_i32, %c0_i32_0 : i32, i32
  }
  func.func @transform_2(%arg0: i32) -> (i32, i32) {
    %c0_i32 = arith.constant 0 : i32
    %c0_i32_0 = arith.constant 0 : i32
    %c0_i32_1 = arith.constant 0 : i32
    return %c0_i32, %c0_i32_0 : i32, i32
  }
  func.func @transform_3(%arg0: i32) -> (i32, i32) {
    %c0_i32 = arith.constant 0 : i32
    %c0_i32_0 = arith.constant 0 : i32
    %c0_i32_1 = arith.constant 0 : i32
    return %c0_i32, %c0_i32_0 : i32, i32
  }
  func.func @transform_4(%arg0: i32) -> (i32, i32) {
    %c0_i32 = arith.constant 0 : i32
    %c0_i32_0 = arith.constant 0 : i32
    %c0_i32_1 = arith.constant 0 : i32
    return %c0_i32, %c0_i32_0 : i32, i32
  }
  func.func @transform_5(%arg0: i32) -> (i32, i32) {
    %c0_i32 = arith.constant 0 : i32
    %c0_i32_0 = arith.constant 0 : i32
    %c0_i32_1 = arith.constant 0 : i32
    return %c0_i32, %c0_i32_0 : i32, i32
  }
}

</mosaic_0001>

<llo_original>
// kernel: fused_forward.1
$region0: #{fused_forward.1}
  #allocation0 [shape = 'u32[]', space=smem, size = 0x4, offset = 0x4, fixed_abs, tag = 'smem constant byte address 0x4 - core index']
  #allocation1 [shape = 'u32[144,128]{1,0:T(1,128)}', space=vmem, size = 0x12000, scoped, tag = 'internal scratch']
  #allocation2 [shape = 'f32[16,256]{1,0:T(8,128)}', space=vmem, size = 0x4000, scoped, tag = 'scratch operand']
  %s0 = inlined_call_operand.vmem [shape: f32[16,16], index: 0, kind: input, shape index: {}]
  %s1 = inlined_call_operand.vmem [shape: f32[1,16], index: 1, kind: input, shape index: {}]
  %s2 = inlined_call_operand.vmem [shape: f32[16,1], index: 2, kind: input, shape index: {}]
  %s3 = inlined_call_operand.vmem [shape: f32[16,1], index: 3, kind: input, shape index: {}]
  %s4 = inlined_call_operand.vmem [shape: f32[16,256], index: 4, kind: input, shape index: {}]
  %s5 = inlined_call_operand.vmem [shape: f32[16,256], index: 5, kind: output, shape index: {}]
  %s6 = sld [smem:[#allocation0]]
  $region30: #{fused_forward.1} parent=0
    _
  %s8 = ssub.s32 1, %s6
  %s9 = scalar_select 0, %s8, %s6
  // Predicated region
  $region2: #{fused_forward.1} parent=0 // pred_check
    _
  $region3: #{fused_forward.1} parent=0 // pred_check_branch
    %11 = sbr.rel (0) target = $region5
  $region4: #{fused_forward.1} parent=0 // pred_region
    _
  $region5: #{fused_forward.1} parent=0 // pred_fallthru
    _
  // Predicated region
  $region6: #{fused_forward.1} parent=0 // pred_check
    _
  $region7: #{fused_forward.1} parent=0 // pred_check_branch
    %13 = sbr.rel (0) target = $region9
  $region8: #{fused_forward.1} parent=0 // pred_region
    _
  $region9: #{fused_forward.1} parent=0 // pred_fallthru
    _
  // Predicated region
  $region10: #{fused_forward.1} parent=0 // pred_check
    _
  $region11: #{fused_forward.1} parent=0 // pred_check_branch
    %15 = sbr.rel (0) target = $region13
  $region12: #{fused_forward.1} parent=0 // pred_region
    _
  $region13: #{fused_forward.1} parent=0 // pred_fallthru
    _
  // Predicated region
  $region14: #{fused_forward.1} parent=0 // pred_check
    _
  $region15: #{fused_forward.1} parent=0 // pred_check_branch
    %17 = sbr.rel (0) target = $region17
  $region16: #{fused_forward.1} parent=0 // pred_region
    _
  $region17: #{fused_forward.1} parent=0 // pred_fallthru
    _
  // Predicated region
  $region18: #{fused_forward.1} parent=0 // pred_check
    _
  $region19: #{fused_forward.1} parent=0 // pred_check_branch
    %19 = sbr.rel (0) target = $region21
  $region20: #{fused_forward.1} parent=0 // pred_region
    _
  $region21: #{fused_forward.1} parent=0 // pred_fallthru
    _
  %v20 = vld [vmem:[%s0] sm:$0xff]
  %v21 = vld [vmem:[%s0 + $0x8] sm:$0xff]
  %v22 = vld [vmem:[%s1] sm:$0x1]
  %v23 = vxor.u32 %v22, 2147483648
  %v24 = vmul.f32 %v23, 1.442695
  %v25 = vpow.pop %v24
  %v26 = vadd.f32 %v25, 1.0
  %v27 = vrcp.pop %v26
  %v28 = vmul.f32 1.0, %v27
  %v30 = vlaneseq
  %v31 = vshrl.u32 %v30, 7
  %v32 = vsub.s32 0, %v31
  %v33 = vrot.slane %v28, %v32
  %v35 = vmul.f32 %v20, %v33
  %v36 = vmul.f32 %v21, %v33
  %v37 = vld [vmem:[%s4] sm:$0xff]
  %v38 = vld [vmem:[%s4 + $0x8] sm:$0xff]
  %v39 = vld [vmem:[%s4 + $0x10] sm:$0xff]
  %v40 = vld [vmem:[%s4 + $0x18] sm:$0xff]
  %vm41 = vcmask 130048
  %v43 = vsel %vm41, %v35, 0
  %v46 = vsel %vm41, %v36, 0
  %48 = vmatprep.subr.mxu0 0.0
  %49 = vmatpush1.msra.mxu0 0.0
  %50 = vmatprep.subr.mxu0 0.0
  %51 = vmatpush1.msra.mxu0 0.0
  %52 = vmatprep.subr.mxu0 0.0
  %53 = vmatpush1.msra.mxu0 0.0
  %54 = vmatprep.subr.mxu0 0.0
  %55 = vmatpush1.msra.mxu0 0.0
  %56 = vmatprep.subr.mxu0 0.0
  %57 = vmatpush1.msra.mxu0 0.0
  %58 = vmatprep.subr.mxu0 0.0
  %59 = vmatpush1.msra.mxu0 0.0
  %60 = vmatprep.subr.mxu0 0.0
  %61 = vmatpush1.msra.mxu0 0.0
  %62 = vmatprep.subr.mxu0 0.0
  %63 = vmatpush1.msra.mxu0 0.0
  %64 = vmatprep.subr.mxu0 0.0
  %65 = vmatpush1.msra.mxu0 0.0
  %66 = vmatprep.subr.mxu0 0.0
  %67 = vmatpush1.msra.mxu0 0.0
  %68 = vmatprep.subr.mxu0 0.0
  %69 = vmatpush1.msra.mxu0 0.0
  %70 = vmatprep.subr.mxu0 0.0
  %71 = vmatpush1.msra.mxu0 0.0
  %72 = vmatprep.subr.mxu0 0.0
  %73 = vmatpush1.msra.mxu0 0.0
  %74 = vmatprep.subr.mxu0 0.0
  %75 = vmatpush1.msra.mxu0 0.0
  %76 = vmatprep.subr.mxu0 %v40
  %77 = vmatpush1.msra.mxu0 %v39
  %78 = vmatprep.subr.mxu0 %v38
  %79 = vmatpush1.msra.mxu0 %v37
  %80 = vmatprep.subr.mxu0 0.0
  %81 = vmatpush2.msra.mxu0 0.0
  %82 = vmatprep.subr.mxu0 0.0
  %83 = vmatpush2.msra.mxu0 0.0
  %84 = vmatprep.subr.mxu0 0.0
  %85 = vmatpush2.msra.mxu0 0.0
  %86 = vmatprep.subr.mxu0 0.0
  %87 = vmatpush2.msra.mxu0 0.0
  %88 = vmatprep.subr.mxu0 0.0
  %89 = vmatpush2.msra.mxu0 0.0
  %90 = vmatprep.subr.mxu0 0.0
  %91 = vmatpush2.msra.mxu0 0.0
  %92 = vmatprep.subr.mxu0 0.0
  %93 = vmatpush2.msra.mxu0 0.0
  %94 = vmatprep.subr.mxu0 0.0
  %95 = vmatpush2.msra.mxu0 0.0
  %96 = vmatprep.subr.mxu0 0.0
  %97 = vmatpush2.msra.mxu0 0.0
  %98 = vmatprep.subr.mxu0 0.0
  %99 = vmatpush2.msra.mxu0 0.0
  %100 = vmatprep.subr.mxu0 0.0
  %101 = vmatpush2.msra.mxu0 0.0
  %102 = vmatprep.subr.mxu0 0.0
  %103 = vmatpush2.msra.mxu0 0.0
  %104 = vmatprep.subr.mxu0 0.0
  %105 = vmatpush2.msra.mxu0 0.0
  %106 = vmatprep.subr.mxu0 0.0
  %107 = vmatpush2.msra.mxu0 0.0
  %108 = vmatprep.subr.mxu0 0.0
  %109 = vmatpush2.msra.mxu0 0.0
  %110 = vmatprep.subr.mxu0 0.0
  %111 = vmatpush2.msra.mxu0 0.0
  %112 = vmatprep.mubr.f32.mxu0 0.0
  %113 = vmatmul.mubr.f32.gmra.mxu0 %v43
  %v114 = vpop.f32.mrf.mxu0
  %v115 = vadd.f32 0.0, %v114
  %v116 = vpop.f32.mrf.mxu0
  %v117 = vadd.f32 0.0, %v116
  %118 = vmatprep.mubr.f32.mxu0 0.0
  %119 = vmatmul.mubr.f32.gmra.mxu0 %v46
  %v120 = vpop.f32.mrf.mxu0
  %v121 = vadd.f32 0.0, %v120
  %v122 = vpop.f32.mrf.mxu0
  %v123 = vadd.f32 0.0, %v122
  %124 = vdwg.mxu0
  %125 = vst [vmem:[#allocation2] sm:$0xff] %v115
  %126 = vst [vmem:[#allocation2 + $0x8] sm:$0xff] %v117
  %127 = vst [vmem:[#allocation2 + $0x10] sm:$0xff] %v121
  %128 = vst [vmem:[#allocation2 + $0x18] sm:$0xff] %v123
  %v129 = vld [vmem:[#allocation2] sm:$0xff]
  %v130 = vld [vmem:[#allocation2 + $0x8] sm:$0xff]
  %v131 = vld [vmem:[#allocation2 + $0x10] sm:$0xff]
  %v132 = vld [vmem:[#allocation2 + $0x18] sm:$0xff]
  %v133 = vadd.f32 %v129, %v130
  %134 = vadd.xlane.f32.xlu0 %v133
  %v135 = vpop.xlane.xlu0 %134
  %v136 = vadd.f32 %v131, %v132
  %137 = vadd.xlane.f32.xlu0 %v136
  %v138 = vpop.xlane.xlu0 %137
  %v139 = vmul.f32 %v135, 0.00390625
  %v140 = vmul.f32 %v138, 0.00390625
  %v141 = vsub.f32 %v129, %v139
  %v142 = vsub.f32 %v130, %v139
  %v143 = vsub.f32 %v131, %v140
  %v144 = vsub.f32 %v132, %v140
  %v145 = vmul.f32 %v141, %v141
  %v146 = vmul.f32 %v142, %v142
  %v147 = vmul.f32 %v143, %v143
  %v148 = vmul.f32 %v144, %v144
  %v149 = vadd.f32 %v145, %v146
  %150 = vadd.xlane.f32.xlu0 %v149
  %v151 = vpop.xlane.xlu0 %150
  %v152 = vadd.f32 %v147, %v148
  %153 = vadd.xlane.f32.xlu0 %v152
  %v154 = vpop.xlane.xlu0 %153
  %v155 = vmul.f32 %v151, 0.00390625
  %v156 = vmul.f32 %v154, 0.00390625
  %v157 = vld [vmem:[%s2] sm:$0xff]
  %v158 = vld [vmem:[%s2 + $0x8] sm:$0xff]
  %v159 = vadd.f32 %v155, 1e-05
  %v160 = vadd.f32 %v156, 1e-05
  %v161 = vrsqrt.pop %v159
  %v162 = vrsqrt.pop %v160
  %v163 = vmul.f32 %v157, %v161
  %v164 = vmul.f32 %v158, %v162
  %166 = vset.pattern.permute.xlu0 0
  %167 = vperm.xlu0 %166, %v163
  %v168 = vpop.permute.xlu0 %167
  %171 = vset.pattern.permute.xlu0 0
  %172 = vperm.xlu0 %171, %v164
  %v173 = vpop.permute.xlu0 %172
  %v175 = vmul.f32 %v141, %v168
  %v176 = vmul.f32 %v142, %v168
  %v177 = vmul.f32 %v143, %v173
  %v178 = vmul.f32 %v144, %v173
  %v179 = vld [vmem:[%s3] sm:$0xff]
  %v180 = vld [vmem:[%s3 + $0x8] sm:$0xff]
  %182 = vset.pattern.permute.xlu0 0
  %183 = vperm.xlu0 %182, %v179
  %v184 = vpop.permute.xlu0 %183
  %187 = vset.pattern.permute.xlu0 0
  %188 = vperm.xlu0 %187, %v180
  %v189 = vpop.permute.xlu0 %188
  %v191 = vadd.f32 %v175, %v184
  %v192 = vadd.f32 %v176, %v184
  %v193 = vadd.f32 %v177, %v189
  %v194 = vadd.f32 %v178, %v189
  %195 = vst [vmem:[%s5] sm:$0xff] %v191
  %196 = vst [vmem:[%s5 + $0x8] sm:$0xff] %v192
  %197 = vst [vmem:[%s5 + $0x10] sm:$0xff] %v193
  %198 = vst [vmem:[%s5 + $0x18] sm:$0xff] %v194
  // Predicated region
  $region22: #{fused_forward.1} parent=0 // pred_check
    _
  $region23: #{fused_forward.1} parent=0 // pred_check_branch
    %200 = sbr.rel (0) target = $region25
  $region24: #{fused_forward.1} parent=0 // pred_region
    _
  $region25: #{fused_forward.1} parent=0 // pred_fallthru
    _
  // Predicated region
  $region26: #{fused_forward.1} parent=0 // pred_check
    _
  $region27: #{fused_forward.1} parent=0 // pred_check_branch
    %202 = sbr.rel (0) target = $region29
  $region28: #{fused_forward.1} parent=0 // pred_region
    _
  $region29: #{fused_forward.1} parent=0 // pred_fallthru
    _

</llo_original>
